<compile_context>
chip_gen: v7x
topology: tpu7x:2x2x1
jax: 0.10.0
libtpu: 0.0.40
codegen_flags: <defaults>
</compile_context>

<pallas_src>
import numpy as np
import jax
import jax.numpy as jnp
from jax.experimental import pallas as pl
from jax.experimental.pallas import tpu as pltpu

EPS = 1e-8  # nn.CosineSimilarity default eps


def trigger_kernel(sent_ref, event_ref, nev_ref, pos_ref,
                   w_ref, wla_ref, wls_ref, out_ref):
    Bc, S, D = sent_ref.shape
    E = event_ref.shape[1]

    sent = sent_ref[...]                       # (Bc,S,D) bf16
    event = event_ref[...]                     # (Bc,E,D) bf16

    # (1) xw = sent @ W — dominant MXU pass, batch folded into rows, bf16 in / f32 acc
    xw = jnp.dot(sent.reshape(Bc * S, D), w_ref[...],
                 preferred_element_type=jnp.float32).reshape(Bc, S, D)

    # (2) 1/||xw|| via rsqrt (EUP slot), kept lane-dense as (Bc,1,S)
    inv_x = jax.lax.rsqrt(
        jnp.maximum(jnp.sum(xw * xw, axis=-1), EPS * EPS))[:, None, :]     # (Bc,1,S)

    # (3) raw bilinear scores, contract D per batch
    raw = jax.lax.dot_general(xw.astype(sent.dtype), event,
                              (((2,), (2,)), ((0,), (0,))),
                              preferred_element_type=jnp.float32)          # (Bc,S,E)

    # (4) (event @ W_att) with 1/||event|| and map_numerator folded in:
    #     att @ W_att == map_num * cos @ (event @ W_att) — the (S,D) attention
    #     intermediate never exists.
    ev_f = event.astype(jnp.float32)
    inv_e = jax.lax.rsqrt(jnp.maximum(
        jnp.sum(ev_f * ev_f, axis=-1, keepdims=True), EPS * EPS))          # (Bc,E,1)
    ev_wla = jnp.dot(event.reshape(Bc * E, D), wla_ref[...],
                     preferred_element_type=jnp.float32).reshape(Bc, E, 2)
    ev_wla = ev_wla * (inv_e * nev_ref[...])                               # (Bc,E,2)

    # (5) attention contribution, produced directly in lane-dense (Bc,2,S) layout
    att = jax.lax.dot_general(ev_wla, raw, (((1,), (2,)), ((0,), (0,))),
                              preferred_element_type=jnp.float32)          # (Bc,2,S)

    # (6) sent contribution of the classifier, also (Bc,2,S): batched dot with the
    #     broadcast (2,D) weight — no transposes needed anywhere in the kernel.
    wls_b = jnp.broadcast_to(wls_ref[...][None], (Bc, 2, D))
    sp = jax.lax.dot_general(wls_b, sent, (((2,), (2,)), ((0,), (0,))),
                             preferred_element_type=jnp.float32)           # (Bc,2,S)

    # (7) fused epilogue: pos/bias term + sent part + scaled attention, ONE store
    out_ref[...] = pos_ref[...] + sp + att * inv_x


def _num_tensorcores():
    """2 TensorCores per chip on v7x; v5e/v6e (and unknown chips) are single-core."""
    try:
        kind = jax.devices()[0].device_kind.lower()
    except Exception:
        return 1
    return 2 if "v7" in kind else 1


def _pick_num_chunks(B, per_batch_bytes, vmem_budget=24 * 1024 * 1024):
    """Smallest divisor of B that (a) feeds every TensorCore and (b) keeps the
    double-buffered per-step working set under the VMEM budget (important on
    v7x's 64 MiB VMEM at production sizes)."""
    cores = _num_tensorcores()
    for d in range(1, B + 1):
        if B % d:
            continue
        if d >= cores and 2 * (B // d) * per_batch_bytes <= vmem_budget:
            return d
    return B


def trigger_detection_head(sent_emb, event_emb, pos_tag, map_num, W, W_lin, b_lin):
    """sent_emb (B,S,D), event_emb (B,E,D), pos_tag (B,S) int, map_num (B,),
       W (D,D), W_lin (2, 2D+P) [nn.Linear layout], b_lin (2,).  Returns (B,S,2)."""
    B, S, D = sent_emb.shape
    E = event_emb.shape[1]
    cdt = jnp.bfloat16

    # classifier weight split (nn.Linear stores (out,in)); the pos part + bias are
    # gathered per token in the wrapper into a tiny (B,2,S) additive term, so the
    # one-hot tensor and its matmul never exist and the bias is always applied.
    wls_t = W_lin[:, :D].astype(cdt)                           # (2,D) sent part
    wla = W_lin[:, D:2 * D].T.astype(cdt)                      # (D,2) attention part
    wlp = W_lin[:, 2 * D:].T                                   # (P,2) pos part, f32
    pos_tag = jnp.where(pos_tag < 0, 16, pos_tag)
    pos_c = jnp.swapaxes(wlp[pos_tag] + b_lin[None, None, :], 1, 2)  # (B,2,S) f32

    nev3 = map_num.astype(jnp.float32).reshape(B, 1, 1)        # per-batch scale

    sent_b = sent_emb.astype(cdt)
    event_b = event_emb.astype(cdt)
    W_b = W.astype(cdt)

    # rough per-batch working set (sent bf16 + event bf16 + f32 xw intermediate +
    # pos/out tiles + padded nev tile) for the chunk picker.
    per_batch = S * D * 2 + E * D * 2 + S * D * 4 + 2 * 2 * S * 4 + 8 * 128 * 4
    num_chunks = _pick_num_chunks(B, per_batch)
    Bc = B // num_chunks

    out_t = pl.pallas_call(
        trigger_kernel,
        out_shape=jax.ShapeDtypeStruct((B, 2, S), jnp.float32),
        grid_spec=pltpu.PrefetchScalarGridSpec(
            num_scalar_prefetch=0,
            grid=(num_chunks,),
            in_specs=[
                pl.BlockSpec((Bc, S, D), lambda c: (c, 0, 0)),   # sent embeddings (bf16)
                pl.BlockSpec((Bc, E, D), lambda c: (c, 0, 0)),   # event embeddings (bf16)
                pl.BlockSpec((Bc, 1, 1), lambda c: (c, 0, 0)),   # map_numerator (f32)
                pl.BlockSpec((Bc, 2, S), lambda c: (c, 0, 0)),   # pos/bias contribution (f32)
                pl.BlockSpec((D, D), lambda c: (0, 0)),          # W (bilinear, bf16)
                pl.BlockSpec((D, 2), lambda c: (0, 0)),          # classifier W (att part)
                pl.BlockSpec((2, D), lambda c: (0, 0)),          # classifier W (sent part)
            ],
            out_specs=pl.BlockSpec((Bc, 2, S), lambda c: (c, 0, 0)),
        ),
        compiler_params=pltpu.CompilerParams(
            dimension_semantics=("parallel",),
            vmem_limit_bytes=48 * 1024 * 1024),
    )(sent_b, event_b, nev3, pos_c, W_b, wla, wls_t)

    # back to the module's (B, S, 2) output layout (kernel stores lane-dense (B,2,S))
    return jnp.swapaxes(out_t, 1, 2)


# ---------- plain-JAX glue (index gather / parameter setup / reference) ----------

def gather_first_subword(all_emb, idxs):
    """Equivalent of get_fist_subword_embeddings: valid indices (>0) form a prefix
    per row; gather them and zero the padded tail."""
    # TODO(synk): could be fused into the kernel via scalar-prefetched index tables
    # + pl.Element(1) row-gather BlockSpecs to avoid the extra HBM round trip.
    valid = idxs > 0
    safe = jnp.where(valid, idxs, 0)
    gathered = jnp.take_along_axis(all_emb, safe[..., None], axis=1)
    return gathered * valid[..., None].astype(all_emb.dtype)


def reference(sent, event, pos_oh, mapn, W, Wl, bl):
    xw = jnp.einsum('bsd,de->bse', sent, W)
    num = jnp.einsum('bsd,bed->bse', xw, event)
    xn = jnp.maximum(jnp.linalg.norm(xw, axis=-1, keepdims=True), EPS)
    en = jnp.maximum(jnp.linalg.norm(event, axis=-1, keepdims=True), EPS)
    logits = num / (xn * jnp.swapaxes(en, -1, -2))
    att = jnp.einsum('bse,bed->bsd', logits, event) * mapn[:, None, None]
    feat = jnp.concatenate([sent, att, pos_oh], axis=-1)
    return feat @ Wl.T + bl


if __name__ == "__main__":
    B, L, D, S, E, P = 2, 24, 32, 16, 8, 17  # batch, encoder seq, EMBEDDING_DIM, sent len, event len, pos_count
    key = jax.random.PRNGKey(0)
    ks = jax.random.split(key, 6)

    # TODO(synk): AutoModel.from_pretrained encoder is not translatable; synthesize its output.
    all_emb = jax.random.normal(ks[0], (B, L, D), jnp.float32)

    # first-subword index lists: valid prefix (>0) then -1 padding, per batch row
    sent_valid = jnp.array([S, S - 3])
    event_valid = jnp.array([E, E - 2])
    idxs_sent = jnp.where(jnp.arange(S)[None, :] < sent_valid[:, None],
                          jnp.arange(S)[None, :] + 1, -1)
    idxs_event = jnp.where(jnp.arange(E)[None, :] < event_valid[:, None],
                           jnp.arange(E)[None, :] + S + 1, -1)

    pos_tag = jax.random.randint(ks[1], (B, S), -2, 16)

    # deterministic parameter init (shapes from __init__); dropout is identity at eval.
    W = jax.random.uniform(ks[2], (D, D), jnp.float32) / np.sqrt(D)
    fan_in = 2 * D + P
    W_lin = (jax.random.uniform(ks[3], (2, fan_in), jnp.float32) - 0.5) * (2.0 / np.sqrt(fan_in))
    b_lin = (jax.random.uniform(ks[4], (2,), jnp.float32) - 0.5) * (2.0 / np.sqrt(fan_in))

    # forward-pass glue
    sent_emb = gather_first_subword(all_emb, idxs_sent)       # (B, S, D)
    event_emb = gather_first_subword(all_emb, idxs_event)     # (B, E, D)
    n_event = jnp.maximum(jnp.sum(idxs_event > 0, axis=-1), 1)  # guard against 0 valid events
    map_num = 1.0 / n_event.astype(jnp.float32)                # (B,)

    out = trigger_detection_head(sent_emb, event_emb, pos_tag, map_num, W, W_lin, b_lin)
    out = jax.block_until_ready(out)
    assert out.shape == (B, S, 2)

    # f32 reference on the bf16-rounded operands (the same values the kernel consumes);
    # tolerance covers the in-kernel bf16 recast of sent@W for the cosine numerator.
    r32 = lambda x: x.astype(jnp.bfloat16).astype(jnp.float32)
    pos_tag_c = jnp.where(pos_tag < 0, 16, pos_tag)
    pos_onehot = jax.nn.one_hot(pos_tag_c, P, dtype=jnp.float32)
    W_lin_r = jnp.concatenate([r32(W_lin[:, :2 * D]), W_lin[:, 2 * D:]], axis=1)
    ref = reference(r32(sent_emb), r32(event_emb), pos_onehot, map_num,
                    r32(W), W_lin_r, b_lin)
    np.testing.assert_allclose(np.asarray(out), np.asarray(ref), rtol=2e-2, atol=2e-2)
    print("KERNEL_OK")
</pallas_src>

<mosaic_0001>
module attributes {stable_mosaic.version = 11 : i64} {
  func.func @trigger_kernel(%arg0: i32, %arg1: memref<2x16x32xbf16, #tpu.memory_space<vmem>>, %arg2: memref<2x8x32xbf16, #tpu.memory_space<vmem>>, %arg3: memref<2x1x1xf32, #tpu.memory_space<vmem>>, %arg4: memref<2x2x16xf32, #tpu.memory_space<vmem>>, %arg5: memref<32x32xbf16, #tpu.memory_space<vmem>>, %arg6: memref<32x2xbf16, #tpu.memory_space<vmem>>, %arg7: memref<2x32xbf16, #tpu.memory_space<vmem>>, %arg8: memref<2x2x16xf32, #tpu.memory_space<vmem>>) attributes {dimension_semantics = [#tpu.dimension_semantics<parallel>], iteration_bounds = array<i64: 1>, scalar_prefetch = 0 : i64, scratch_operands = 0 : i64, tpu.core_type = #tpu.core_type<tc>, window_params = [{transform_indices = @transform_0, window_bounds = array<i64: 2, 16, 32>}, {transform_indices = @transform_1, window_bounds = array<i64: 2, 8, 32>}, {transform_indices = @transform_2, window_bounds = array<i64: 2, 1, 1>}, {transform_indices = @transform_3, window_bounds = array<i64: 2, 2, 16>}, {pipeline_mode = #tpu.pipeline_mode<synchronous>, transform_indices = @transform_4, window_bounds = array<i64: 32, 32>}, {pipeline_mode = #tpu.pipeline_mode<synchronous>, transform_indices = @transform_5, window_bounds = array<i64: 32, 2>}, {pipeline_mode = #tpu.pipeline_mode<synchronous>, transform_indices = @transform_6, window_bounds = array<i64: 2, 32>}, {transform_indices = @transform_7, window_bounds = array<i64: 2, 2, 16>}]} {
    %c0 = arith.constant 0 : index
    %c0_0 = arith.constant 0 : index
    %c0_1 = arith.constant 0 : index
    %0 = vector.load %arg1[%c0, %c0_0, %c0_1] : memref<2x16x32xbf16, #tpu.memory_space<vmem>>, vector<2x16x32xbf16>
    %c0_2 = arith.constant 0 : index
    %c0_3 = arith.constant 0 : index
    %c0_4 = arith.constant 0 : index
    %1 = vector.load %arg2[%c0_2, %c0_3, %c0_4] : memref<2x8x32xbf16, #tpu.memory_space<vmem>>, vector<2x8x32xbf16>
    %2 = vector.shape_cast %0 : vector<2x16x32xbf16> to vector<32x32xbf16>
    %c0_5 = arith.constant 0 : index
    %c0_6 = arith.constant 0 : index
    %3 = vector.load %arg5[%c0_5, %c0_6] : memref<32x32xbf16, #tpu.memory_space<vmem>>, vector<32x32xbf16>
    %cst = arith.constant dense<0.000000e+00> : vector<32x32xf32>
    %4 = tpu.matmul %2, %3, %cst {dimension_numbers = #tpu.dot_dimension_numbers<[1], [0], [0], [1], [0, 0, 1, 1], [], []>} : vector<32x32xbf16>, vector<32x32xbf16>, vector<32x32xf32> -> vector<32x32xf32>
    %5 = vector.shape_cast %4 : vector<32x32xf32> to vector<2x16x32xf32>
    %6 = arith.mulf %5, %5 : vector<2x16x32xf32>
    %cst_7 = arith.constant dense<0.000000e+00> : vector<2x16xf32>
    %7 = vector.multi_reduction <add>, %6, %cst_7 [2] : vector<2x16x32xf32> to vector<2x16xf32>
    %cst_8 = arith.constant 1.000000e-16 : f32
    %8 = vector.broadcast %cst_8 : f32 to vector<2x16xf32>
    %9 = arith.maximumf %7, %8 : vector<2x16xf32>
    %10 = math.rsqrt %9 : vector<2x16xf32>
    %11 = vector.shape_cast %10 : vector<2x16xf32> to vector<2x1x16xf32>
    %12 = arith.truncf %5 : vector<2x16x32xf32> to vector<2x16x32xbf16>
    %cst_9 = arith.constant dense<0.000000e+00> : vector<2x16x8xf32>
    %13 = tpu.matmul %12, %1, %cst_9 {dimension_numbers = #tpu.dot_dimension_numbers<[2], [2], [1], [1], [0, 0, 0, 1, 1, 1], [0], [0]>} : vector<2x16x32xbf16>, vector<2x8x32xbf16>, vector<2x16x8xf32> -> vector<2x16x8xf32>
    %14 = arith.extf %1 : vector<2x8x32xbf16> to vector<2x8x32xf32>
    %15 = arith.mulf %14, %14 : vector<2x8x32xf32>
    %cst_10 = arith.constant dense<0.000000e+00> : vector<2x8xf32>
    %16 = vector.multi_reduction <add>, %15, %cst_10 [2] : vector<2x8x32xf32> to vector<2x8xf32>
    %17 = vector.shape_cast %16 : vector<2x8xf32> to vector<2x8x1xf32>
    %cst_11 = arith.constant 1.000000e-16 : f32
    %18 = vector.broadcast %cst_11 : f32 to vector<2x8x1xf32>
    %19 = arith.maximumf %17, %18 : vector<2x8x1xf32>
    %20 = math.rsqrt %19 : vector<2x8x1xf32>
    %21 = vector.shape_cast %1 : vector<2x8x32xbf16> to vector<16x32xbf16>
    %c0_12 = arith.constant 0 : index
    %c0_13 = arith.constant 0 : index
    %22 = vector.load %arg6[%c0_12, %c0_13] : memref<32x2xbf16, #tpu.memory_space<vmem>>, vector<32x2xbf16>
    %cst_14 = arith.constant dense<0.000000e+00> : vector<16x2xf32>
    %23 = tpu.matmul %21, %22, %cst_14 {dimension_numbers = #tpu.dot_dimension_numbers<[1], [0], [0], [1], [0, 0, 1, 1], [], []>} : vector<16x32xbf16>, vector<32x2xbf16>, vector<16x2xf32> -> vector<16x2xf32>
    %24 = vector.shape_cast %23 : vector<16x2xf32> to vector<2x8x2xf32>
    %c0_15 = arith.constant 0 : index
    %c0_16 = arith.constant 0 : index
    %c0_17 = arith.constant 0 : index
    %25 = vector.load %arg3[%c0_15, %c0_16, %c0_17] : memref<2x1x1xf32, #tpu.memory_space<vmem>>, vector<2x1x1xf32>
    %26 = vector.broadcast %25 : vector<2x1x1xf32> to vector<2x8x1xf32>
    %27 = arith.mulf %20, %26 : vector<2x8x1xf32>
    %28 = vector.broadcast %27 : vector<2x8x1xf32> to vector<2x8x2xf32>
    %29 = arith.mulf %24, %28 : vector<2x8x2xf32>
    %cst_18 = arith.constant dense<0.000000e+00> : vector<2x2x16xf32>
    %30 = tpu.matmul %29, %13, %cst_18 {dimension_numbers = #tpu.dot_dimension_numbers<[1], [2], [2], [1], [0, 0, 0, 2, 1, 1], [0], [0]>} : vector<2x8x2xf32>, vector<2x16x8xf32>, vector<2x2x16xf32> -> vector<2x2x16xf32>
    %c0_19 = arith.constant 0 : index
    %c0_20 = arith.constant 0 : index
    %31 = vector.load %arg7[%c0_19, %c0_20] : memref<2x32xbf16, #tpu.memory_space<vmem>>, vector<2x32xbf16>
    %32 = vector.shape_cast %31 : vector<2x32xbf16> to vector<1x2x32xbf16>
    %33 = vector.shape_cast %32 : vector<1x2x32xbf16> to vector<1x2x32xbf16>
    %34 = vector.broadcast %33 : vector<1x2x32xbf16> to vector<2x2x32xbf16>
    %cst_21 = arith.constant dense<0.000000e+00> : vector<2x2x16xf32>
    %35 = tpu.matmul %34, %0, %cst_21 {dimension_numbers = #tpu.dot_dimension_numbers<[2], [2], [1], [1], [0, 0, 0, 1, 1, 1], [0], [0]>} : vector<2x2x32xbf16>, vector<2x16x32xbf16>, vector<2x2x16xf32> -> vector<2x2x16xf32>
    %c0_22 = arith.constant 0 : index
    %c0_23 = arith.constant 0 : index
    %c0_24 = arith.constant 0 : index
    %36 = vector.load %arg4[%c0_22, %c0_23, %c0_24] : memref<2x2x16xf32, #tpu.memory_space<vmem>>, vector<2x2x16xf32>
    %37 = arith.addf %36, %35 : vector<2x2x16xf32>
    %38 = vector.broadcast %11 : vector<2x1x16xf32> to vector<2x2x16xf32>
    %39 = arith.mulf %30, %38 : vector<2x2x16xf32>
    %40 = arith.addf %37, %39 : vector<2x2x16xf32>
    %c0_25 = arith.constant 0 : index
    %c0_26 = arith.constant 0 : index
    %c0_27 = arith.constant 0 : index
    %41 = vector.load %arg8[%c0_25, %c0_26, %c0_27] : memref<2x2x16xf32, #tpu.memory_space<vmem>>, vector<2x2x16xf32>
    tpu.vector_store %arg8[%c0_25, %c0_26, %c0_27], %40 {strides = array<i32>} : memref<2x2x16xf32, #tpu.memory_space<vmem>>, vector<2x2x16xf32>,
    return
  }
  func.func @transform_0(%arg0: i32) -> (i32, i32, i32) {
    %c0_i32 = arith.constant 0 : i32
    %c0_i32_0 = arith.constant 0 : i32
    %c0_i32_1 = arith.constant 0 : i32
    return %arg0, %c0_i32, %c0_i32_0 : i32, i32, i32
  }
  func.func @transform_1(%arg0: i32) -> (i32, i32, i32) {
    %c0_i32 = arith.constant 0 : i32
    %c0_i32_0 = arith.constant 0 : i32
    %c0_i32_1 = arith.constant 0 : i32
    return %arg0, %c0_i32, %c0_i32_0 : i32, i32, i32
  }
  func.func @transform_2(%arg0: i32) -> (i32, i32, i32) {
    %c0_i32 = arith.constant 0 : i32
    %c0_i32_0 = arith.constant 0 : i32
    %c0_i32_1 = arith.constant 0 : i32
    return %arg0, %c0_i32, %c0_i32_0 : i32, i32, i32
  }
  func.func @transform_3(%arg0: i32) -> (i32, i32, i32) {
    %c0_i32 = arith.constant 0 : i32
    %c0_i32_0 = arith.constant 0 : i32
    %c0_i32_1 = arith.constant 0 : i32
    return %arg0, %c0_i32, %c0_i32_0 : i32, i32, i32
  }
  func.func @transform_4(%arg0: i32) -> (i32, i32) {
    %c0_i32 = arith.constant 0 : i32
    %c0_i32_0 = arith.constant 0 : i32
    %c0_i32_1 = arith.constant 0 : i32
    return %c0_i32, %c0_i32_0 : i32, i32
  }
  func.func @transform_5(%arg0: i32) -> (i32, i32) {
    %c0_i32 = arith.constant 0 : i32
    %c0_i32_0 = arith.constant 0 : i32
    %c0_i32_1 = arith.constant 0 : i32
    return %c0_i32, %c0_i32_0 : i32, i32
  }
  func.func @transform_6(%arg0: i32) -> (i32, i32) {
    %c0_i32 = arith.constant 0 : i32
    %c0_i32_0 = arith.constant 0 : i32
    %c0_i32_1 = arith.constant 0 : i32
    return %c0_i32, %c0_i32_0 : i32, i32
  }
  func.func @transform_7(%arg0: i32) -> (i32, i32, i32) {
    %c0_i32 = arith.constant 0 : i32
    %c0_i32_0 = arith.constant 0 : i32
    %c0_i32_1 = arith.constant 0 : i32
    return %arg0, %c0_i32, %c0_i32_0 : i32, i32, i32
  }
}

</mosaic_0001>

<llo_original>
// kernel: tpu_custom_call.1
$region0: #{tpu_custom_call.1}
  #allocation0 [shape = 'u32[]', space=smem, size = 0x4, offset = 0x4, fixed_abs, tag = 'smem constant byte address 0x4 - core index']
  #allocation1 [shape = 'u32[144,128]{1,0:T(1,128)}', space=vmem, size = 0x12000, scoped, tag = 'internal scratch']
  %s0 = inlined_call_operand.vmem [shape: bf16[2,16,32], index: 0, kind: input, shape index: {}]
  %s1 = inlined_call_operand.hbm [shape: bf16[2,8,32], index: 1, kind: input, shape index: {}]
  %s2 = inlined_call_operand.vmem [shape: f32[2,1,1], index: 2, kind: input, shape index: {}]
  %s3 = inlined_call_operand.hbm [shape: f32[2,2,16], index: 3, kind: input, shape index: {}]
  %s4 = inlined_call_operand.vmem [shape: bf16[32,32], index: 4, kind: input, shape index: {}]
  %s5 = inlined_call_operand.vmem [shape: bf16[32,2], index: 5, kind: input, shape index: {}]
  %s6 = inlined_call_operand.vmem [shape: bf16[2,32], index: 6, kind: input, shape index: {}]
  %s7 = inlined_call_operand.hbm [shape: f32[2,2,16], index: 7, kind: output, shape index: {}]
  %s8 = sld [smem:[#allocation0]]
  $region46: #{tpu_custom_call.1} parent=0
    _
  %s10 = ssub.s32 1, %s8
  %s11 = scalar_select 0, %s10, %s8
  $region1: #{tpu_custom_call.1} parent=0
    #allocation2 [shape = 'u8[4096]{0}', space=vmem, size = 0x1000, scoped, tag = 'input window, operand 1, single buffered']
    #allocation3 [shape = 's32[1]{0}', space=sflag, size = 0x4, scoped, tag = 'scoped memory for tpu_custom_call.1']
    #allocation4 [shape = 's32[1]{0}', space=sflag, size = 0x4, scoped, tag = 'scoped memory for tpu_custom_call.1']
    #allocation5 [shape = 'u8[2048]{0}', space=vmem, size = 0x800, scoped, tag = 'input window, operand 3, single buffered']
    #allocation6 [shape = 's32[1]{0}', space=sflag, size = 0x4, scoped, tag = 'scoped memory for tpu_custom_call.1']
    #allocation7 [shape = 'u8[2048]{0}', space=vmem, size = 0x800, scoped, tag = 'output window, operand 0, single buffered']
    %12 = vsyncpa [#allocation3], 0
    %13 = vsyncpa [#allocation6], 0
    %14 = vsyncpa [#allocation4], 0
    // Predicated region
    $region2: #{tpu_custom_call.1} parent=1 // pred_check
      _
    $region3: #{tpu_custom_call.1} parent=1 // pred_check_branch
      %16 = sbr.rel (0) target = $region5
    $region4: #{tpu_custom_call.1} parent=1 // pred_region
      _
    $region5: #{tpu_custom_call.1} parent=1 // pred_fallthru
      _
    // Predicated region
    $region6: #{tpu_custom_call.1} parent=1 // pred_check
      _
    $region7: #{tpu_custom_call.1} parent=1 // pred_check_branch
      %18 = sbr.rel (0) target = $region9
    $region8: #{tpu_custom_call.1} parent=1 // pred_region
      %s20 = ssub.s32 128, 128
      %21 = vsyncadd [#allocation3], %s20
      %s22 = sshll.u32 [#allocation2], 4
      %s23 = int_to_ptr.vmem [resolvable:$true] %s22
      %28 = dma.hbm_to_vmem [thread:$0]  %s1, 128, %s23, [#allocation3], 64, 64, 4
    $region9: #{tpu_custom_call.1} parent=1 // pred_fallthru
      _
    // Predicated region
    $region10: #{tpu_custom_call.1} parent=1 // pred_check
      _
    $region11: #{tpu_custom_call.1} parent=1 // pred_check_branch
      %30 = sbr.rel (0) target = $region13
    $region12: #{tpu_custom_call.1} parent=1 // pred_region
      _
    $region13: #{tpu_custom_call.1} parent=1 // pred_fallthru
      _
    // Predicated region
    $region14: #{tpu_custom_call.1} parent=1 // pred_check
      _
    $region15: #{tpu_custom_call.1} parent=1 // pred_check_branch
      %32 = sbr.rel (0) target = $region17
    $region16: #{tpu_custom_call.1} parent=1 // pred_region
      %s34 = ssub.s32 64, 64
      %35 = vsyncadd [#allocation6], %s34
      %s36 = sshll.u32 [#allocation5], 4
      %s37 = int_to_ptr.vmem [resolvable:$true] %s36
      %42 = dma.hbm_to_vmem [thread:$0]  %s3, 64, %s37, [#allocation6], 32, 32, 2
    $region17: #{tpu_custom_call.1} parent=1 // pred_fallthru
      _
    // Predicated region
    $region18: #{tpu_custom_call.1} parent=1 // pred_check
      _
    $region19: #{tpu_custom_call.1} parent=1 // pred_check_branch
      %44 = sbr.rel (0) target = $region21
    $region20: #{tpu_custom_call.1} parent=1 // pred_region
      _
    $region21: #{tpu_custom_call.1} parent=1 // pred_fallthru
      _
    // Predicated region
    $region22: #{tpu_custom_call.1} parent=1 // pred_check
      _
    $region23: #{tpu_custom_call.1} parent=1 // pred_check_branch
      %46 = sbr.rel (0) target = $region25
    $region24: #{tpu_custom_call.1} parent=1 // pred_region
      _
    $region25: #{tpu_custom_call.1} parent=1 // pred_fallthru
      _
    // Predicated region
    $region26: #{tpu_custom_call.1} parent=1 // pred_check
      _
    $region27: #{tpu_custom_call.1} parent=1 // pred_check_branch
      %48 = sbr.rel (0) target = $region29
    $region28: #{tpu_custom_call.1} parent=1 // pred_region
      _
    $region29: #{tpu_custom_call.1} parent=1 // pred_fallthru
      _
    // Predicated region
    $region30: #{tpu_custom_call.1} parent=1 // pred_check
      _
    $region31: #{tpu_custom_call.1} parent=1 // pred_check_branch
      %50 = sbr.rel (0) target = $region33
    $region32: #{tpu_custom_call.1} parent=1 // pred_region
      %51 = dma.done [#allocation3], 128
    $region33: #{tpu_custom_call.1} parent=1 // pred_fallthru
      _
    // Predicated region
    $region34: #{tpu_custom_call.1} parent=1 // pred_check
      _
    $region35: #{tpu_custom_call.1} parent=1 // pred_check_branch
      %53 = sbr.rel (0) target = $region37
    $region36: #{tpu_custom_call.1} parent=1 // pred_region
      %54 = dma.done [#allocation6], 64
    $region37: #{tpu_custom_call.1} parent=1 // pred_fallthru
      _
    %v56 = vld [vmem:[%s0] sm:$0xf]
    %v57 = vld [vmem:[%s0 + $0x4] sm:$0xf]
    %v58 = vld [vmem:[%s0 + $0x8] sm:$0xf]
    %v59 = vld [vmem:[%s0 + $0xc] sm:$0xf]
    %v60 = vld [vmem:[#allocation2] sm:$0xf]
    %v61 = vld [vmem:[#allocation2 + $0x4] sm:$0xf]
    %v62 = vld [vmem:[%s4] sm:$0xf]
    %v63 = vld [vmem:[%s4 + $0x4] sm:$0xf]
    %v64 = vld [vmem:[%s4 + $0x8] sm:$0xf]
    %v65 = vld [vmem:[%s4 + $0xc] sm:$0xf]
    %v70 = vunpack.c.l.b16 %v56
    %v71 = vunpack.c.l.b16 %v57
    %v72 = vunpack.c.l.b16 %v58
    %v73 = vunpack.c.l.b16 %v59
    %v74 = vpack.c.b16 %v71, %v70
    %v75 = vpack.c.b16 %v73, %v72
    %v80 = vunpack.c.l.b16 %v62
    %v81 = vunpack.c.l.b16 %v63
    %v82 = vunpack.c.l.b16 %v64
    %v83 = vunpack.c.l.b16 %v65
    %v84 = vpack.c.b16 %v81, %v80
    %v85 = vpack.c.b16 %v83, %v82
    %vm88 = vcmask 261120
    %v90 = vsel %vm88, %v74, 0
    %v93 = vsel %vm88, %v75, 0
    %95 = vmatprep.subr.bf16.mxu0 0
    %96 = vmatpush1.bf16.msra.mxu0 %v84
    %97 = vmatprep.subr.bf16.mxu0 0
    %98 = vmatpush1.bf16.msra.mxu0 %v85
    %99 = vmatprep.subr.bf16.mxu0 0
    %100 = vmatpush1.bf16.msra.mxu0 0
    %101 = vmatprep.subr.bf16.mxu0 0
    %102 = vmatpush1.bf16.msra.mxu0 0
    %103 = vmatprep.subr.bf16.mxu0 0
    %104 = vmatpush1.bf16.msra.mxu0 0
    %105 = vmatprep.subr.bf16.mxu0 0
    %106 = vmatpush1.bf16.msra.mxu0 0
    %107 = vmatprep.subr.bf16.mxu0 0
    %108 = vmatpush1.bf16.msra.mxu0 0
    %109 = vmatprep.subr.bf16.mxu0 0
    %110 = vmatpush1.bf16.msra.mxu0 0
    %111 = vmatprep.subr.bf16.mxu0 0
    %112 = vmatpush1.bf16.msra.mxu0 0
    %113 = vmatprep.subr.bf16.mxu0 0
    %114 = vmatpush1.bf16.msra.mxu0 0
    %115 = vmatprep.subr.bf16.mxu0 0
    %116 = vmatpush1.bf16.msra.mxu0 0
    %117 = vmatprep.subr.bf16.mxu0 0
    %118 = vmatpush1.bf16.msra.mxu0 0
    %119 = vmatprep.subr.bf16.mxu0 0
    %120 = vmatpush1.bf16.msra.mxu0 0
    %121 = vmatprep.subr.bf16.mxu0 0
    %122 = vmatpush1.bf16.msra.mxu0 0
    %123 = vmatprep.subr.bf16.mxu0 0
    %124 = vmatpush1.bf16.msra.mxu0 0
    %125 = vmatprep.subr.bf16.mxu0 0
    %126 = vmatpush1.bf16.msra.mxu0 0
    %127 = vmatprep.mubr.bf16.mxu0 0
    %128 = vmatmul.mubr.bf16.gmra.mrb[0].mxu0 %v90
    %v129 = vpop.f32.mrb[0].mxu0
    %v130 = vadd.f32 0.0, %v129
    %v131 = vpop.f32.mrb[0].mxu0
    %v132 = vpop.f32.mrb[0].mxu0
    %v133 = vadd.f32 0.0, %v132
    %v134 = vpop.f32.mrb[0].mxu0
    %135 = vmatprep.mubr.bf16.mxu0 0
    %136 = vmatmul.mubr.bf16.gmra.mrb[0].mxu0 %v93
    %v137 = vpop.f32.mrb[0].mxu0
    %v138 = vadd.f32 0.0, %v137
    %v139 = vpop.f32.mrb[0].mxu0
    %v140 = vpop.f32.mrb[0].mxu0
    %v141 = vadd.f32 0.0, %v140
    %v142 = vpop.f32.mrb[0].mxu0
    %143 = vdwg.mxu0
    %v144 = vmul.f32 %v130, %v130
    %v145 = vmul.f32 %v133, %v133
    %v146 = vmul.f32 %v138, %v138
    %v147 = vmul.f32 %v141, %v141
    %v148 = vsel %vm88, %v144, 0.0
    %149 = vadd.xlane.f32.xlu0 %v148
    %v150 = vpop.xlane.xlu0 %149
    %v151 = vsel %vm88, %v145, 0.0
    %152 = vadd.xlane.f32.xlu0 %v151
    %v153 = vpop.xlane.xlu0 %152
    %v154 = vsel %vm88, %v146, 0.0
    %155 = vadd.xlane.f32.xlu0 %v154
    %v156 = vpop.xlane.xlu0 %155
    %v157 = vsel %vm88, %v147, 0.0
    %158 = vadd.xlane.f32.xlu0 %v157
    %v159 = vpop.xlane.xlu0 %158
    %v160 = vmax.f32 %v150, 1e-16
    %v161 = vmax.f32 %v153, 1e-16
    %v162 = vmax.f32 %v156, 1e-16
    %v163 = vmax.f32 %v159, 1e-16
    %v164 = vrsqrt.pop %v160
    %v165 = vrsqrt.pop %v161
    %v166 = vrsqrt.pop %v162
    %v167 = vrsqrt.pop %v163
    %v168 = vpack.c.bf16 %v133, %v130
    %v169 = vpack.c.bf16 %v141, %v138
    %v171 = vsel %vm88, %v168, 0
    %v174 = vsel %vm88, %v60, 0
    %176 = vmatprep.subr.bf16.mxu0 0
    %177 = vmatpush1.bf16.xpose.msra.mxu0 %v174
    %178 = vmatprep.subr.bf16.mxu0 0
    %179 = vmatpush1.bf16.xpose.msra.mxu0 0
    %180 = vmatprep.subr.bf16.mxu0 0
    %181 = vmatpush1.bf16.xpose.msra.mxu0 0
    %182 = vmatprep.subr.bf16.mxu0 0
    %183 = vmatpush1.bf16.xpose.msra.mxu0 0
    %184 = vmatprep.subr.bf16.mxu0 0
    %185 = vmatpush1.bf16.xpose.msra.mxu0 0
    %186 = vmatprep.subr.bf16.mxu0 0
    %187 = vmatpush1.bf16.xpose.msra.mxu0 0
    %188 = vmatprep.subr.bf16.mxu0 0
    %189 = vmatpush1.bf16.xpose.msra.mxu0 0
    %190 = vmatprep.subr.bf16.mxu0 0
    %191 = vmatpush1.bf16.xpose.msra.mxu0 0
    %192 = vmatprep.subr.bf16.mxu0 0
    %193 = vmatpush1.bf16.xpose.msra.mxu0 0
    %194 = vmatprep.subr.bf16.mxu0 0
    %195 = vmatpush1.bf16.xpose.msra.mxu0 0
    %196 = vmatprep.subr.bf16.mxu0 0
    %197 = vmatpush1.bf16.xpose.msra.mxu0 0
    %198 = vmatprep.subr.bf16.mxu0 0
    %199 = vmatpush1.bf16.xpose.msra.mxu0 0
    %200 = vmatprep.subr.bf16.mxu0 0
    %201 = vmatpush1.bf16.xpose.msra.mxu0 0
    %202 = vmatprep.subr.bf16.mxu0 0
    %203 = vmatpush1.bf16.xpose.msra.mxu0 0
    %204 = vmatprep.subr.bf16.mxu0 0
    %205 = vmatpush1.bf16.xpose.msra.mxu0 0
    %206 = vmatprep.subr.bf16.mxu0 0
    %207 = vmatpush1.bf16.xpose.msra.mxu0 0
    %208 = vmatprep.mubr.bf16.mxu0 0
    %209 = vmatmul.mubr.bf16.gmra.mrb[0].mxu0 %v171
    %v210 = vpop.f32.mrb[0].mxu0
    %v211 = vadd.f32 0.0, %v210
    %v212 = vpop.f32.mrb[0].mxu0
    %v213 = vpop.f32.mrb[0].mxu0
    %v214 = vadd.f32 0.0, %v213
    %v215 = vpop.f32.mrb[0].mxu0
    %216 = vdwg.mxu0
    %v218 = vsel %vm88, %v169, 0
    %v221 = vsel %vm88, %v61, 0
    %223 = vmatprep.subr.bf16.mxu0 0
    %224 = vmatpush1.bf16.xpose.msra.mxu0 %v221
    %225 = vmatprep.subr.bf16.mxu0 0
    %226 = vmatpush1.bf16.xpose.msra.mxu0 0
    %227 = vmatprep.subr.bf16.mxu0 0
    %228 = vmatpush1.bf16.xpose.msra.mxu0 0
    %229 = vmatprep.subr.bf16.mxu0 0
    %230 = vmatpush1.bf16.xpose.msra.mxu0 0
    %231 = vmatprep.subr.bf16.mxu0 0
    %232 = vmatpush1.bf16.xpose.msra.mxu0 0
    %233 = vmatprep.subr.bf16.mxu0 0
    %234 = vmatpush1.bf16.xpose.msra.mxu0 0
    %235 = vmatprep.subr.bf16.mxu0 0
    %236 = vmatpush1.bf16.xpose.msra.mxu0 0
    %237 = vmatprep.subr.bf16.mxu0 0
    %238 = vmatpush1.bf16.xpose.msra.mxu0 0
    %239 = vmatprep.subr.bf16.mxu0 0
    %240 = vmatpush1.bf16.xpose.msra.mxu0 0
    %241 = vmatprep.subr.bf16.mxu0 0
    %242 = vmatpush1.bf16.xpose.msra.mxu0 0
    %243 = vmatprep.subr.bf16.mxu0 0
    %244 = vmatpush1.bf16.xpose.msra.mxu0 0
    %245 = vmatprep.subr.bf16.mxu0 0
    %246 = vmatpush1.bf16.xpose.msra.mxu0 0
    %247 = vmatprep.subr.bf16.mxu0 0
    %248 = vmatpush1.bf16.xpose.msra.mxu0 0
    %249 = vmatprep.subr.bf16.mxu0 0
    %250 = vmatpush1.bf16.xpose.msra.mxu0 0
    %251 = vmatprep.subr.bf16.mxu0 0
    %252 = vmatpush1.bf16.xpose.msra.mxu0 0
    %253 = vmatprep.subr.bf16.mxu0 0
    %254 = vmatpush1.bf16.xpose.msra.mxu0 0
    %255 = vmatprep.mubr.bf16.mxu0 0
    %256 = vmatmul.mubr.bf16.gmra.mrb[0].mxu0 %v218
    %v257 = vpop.f32.mrb[0].mxu0
    %v258 = vadd.f32 0.0, %v257
    %v259 = vpop.f32.mrb[0].mxu0
    %v260 = vpop.f32.mrb[0].mxu0
    %v261 = vadd.f32 0.0, %v260
    %v262 = vpop.f32.mrb[0].mxu0
    %263 = vdwg.mxu0
    %v264 = vunpack.c.l.bf16 %v60
    %v265 = vunpack.c.l.bf16 %v61
    %v266 = vmul.f32 %v264, %v264
    %v267 = vmul.f32 %v265, %v265
    %v268 = vsel %vm88, %v266, 0.0
    %269 = vadd.xlane.f32.xlu0 %v268
    %v270 = vpop.xlane.xlu0 %269
    %v271 = vsel %vm88, %v267, 0.0
    %272 = vadd.xlane.f32.xlu0 %v271
    %v273 = vpop.xlane.xlu0 %272
    %v274 = vmax.f32 %v270, 1e-16
    %v275 = vmax.f32 %v273, 1e-16
    %v276 = vrsqrt.pop %v274
    %v277 = vrsqrt.pop %v275
    %v278 = vld [vmem:[%s5] sm:$0xf]
    %v279 = vld [vmem:[%s5 + $0x4] sm:$0xf]
    %v280 = vld [vmem:[%s5 + $0x8] sm:$0xf]
    %v281 = vld [vmem:[%s5 + $0xc] sm:$0xf]
    %v284 = vunpack.c.l.b16 %v60
    %v285 = vunpack.c.l.b16 %v61
    %v286 = vpack.c.b16 %v285, %v284
    %v291 = vunpack.c.l.b16 %v278
    %v292 = vunpack.c.l.b16 %v279
    %v293 = vunpack.c.l.b16 %v280
    %v294 = vunpack.c.l.b16 %v281
    %v295 = vpack.c.b16 %v292, %v291
    %v296 = vpack.c.b16 %v294, %v293
    %v300 = vsel %vm88, %v286, 0
    %302 = vmatprep.subr.bf16.mxu0 0
    %303 = vmatpush1.bf16.msra.mxu0 %v295
    %304 = vmatprep.subr.bf16.mxu0 0
    %305 = vmatpush1.bf16.msra.mxu0 %v296
    %306 = vmatprep.subr.bf16.mxu0 0
    %307 = vmatpush1.bf16.msra.mxu0 0
    %308 = vmatprep.subr.bf16.mxu0 0
    %309 = vmatpush1.bf16.msra.mxu0 0
    %310 = vmatprep.subr.bf16.mxu0 0
    %311 = vmatpush1.bf16.msra.mxu0 0
    %312 = vmatprep.subr.bf16.mxu0 0
    %313 = vmatpush1.bf16.msra.mxu0 0
    %314 = vmatprep.subr.bf16.mxu0 0
    %315 = vmatpush1.bf16.msra.mxu0 0
    %316 = vmatprep.subr.bf16.mxu0 0
    %317 = vmatpush1.bf16.msra.mxu0 0
    %318 = vmatprep.subr.bf16.mxu0 0
    %319 = vmatpush1.bf16.msra.mxu0 0
    %320 = vmatprep.subr.bf16.mxu0 0
    %321 = vmatpush1.bf16.msra.mxu0 0
    %322 = vmatprep.subr.bf16.mxu0 0
    %323 = vmatpush1.bf16.msra.mxu0 0
    %324 = vmatprep.subr.bf16.mxu0 0
    %325 = vmatpush1.bf16.msra.mxu0 0
    %326 = vmatprep.subr.bf16.mxu0 0
    %327 = vmatpush1.bf16.msra.mxu0 0
    %328 = vmatprep.subr.bf16.mxu0 0
    %329 = vmatpush1.bf16.msra.mxu0 0
    %330 = vmatprep.subr.bf16.mxu0 0
    %331 = vmatpush1.bf16.msra.mxu0 0
    %332 = vmatprep.subr.bf16.mxu0 0
    %333 = vmatpush1.bf16.msra.mxu0 0
    %334 = vmatprep.mubr.bf16.mxu0 0
    %335 = vmatmul.mubr.bf16.gmra.mrb[0].mxu0 %v300
    %v336 = vpop.f32.mrb[0].mxu0
    %v337 = vadd.f32 0.0, %v336
    %v338 = vpop.f32.mrb[0].mxu0
    %v339 = vpop.f32.mrb[0].mxu0
    %v340 = vadd.f32 0.0, %v339
    %v341 = vpop.f32.mrb[0].mxu0
    %342 = vdwg.mxu0
    %v343 = vld [vmem:[%s2] sm:$0x1]
    %v344 = vld [vmem:[%s2 + $0x1] sm:$0x1]
    %v347 = vlaneseq
    %v348 = vshrl.u32 %v347, 7
    %v349 = vsub.s32 0, %v348
    %v350 = vrot.slane %v343, %v349
    %v351 = vlaneseq
    %v352 = vshrl.u32 %v351, 7
    %v353 = vsub.s32 0, %v352
    %v354 = vrot.slane %v344, %v353
    %v357 = vmul.f32 %v276, %v350
    %v358 = vmul.f32 %v277, %v354
    %360 = vset.pattern.permute.xlu0 0
    %361 = vperm.xlu0 %360, %v357
    %v362 = vpop.permute.xlu0 %361
    %365 = vset.pattern.permute.xlu0 0
    %366 = vperm.xlu0 %365, %v358
    %v367 = vpop.permute.xlu0 %366
    %v369 = vmul.f32 %v337, %v362
    %v370 = vmul.f32 %v340, %v367
    %371 = vxpose.xlu0.b32.start [1/16] %v369, 128
    %372 = vxpose.xlu0.b32.cont [2/16] 0.0, 128
    %373 = vxpose.xlu0.b32.cont [3/16] 0.0, 128
    %374 = vxpose.xlu0.b32.cont [4/16] 0.0, 128
    %375 = vxpose.xlu0.b32.cont [5/16] 0.0, 128
    %376 = vxpose.xlu0.b32.cont [6/16] 0.0, 128
    %377 = vxpose.xlu0.b32.cont [7/16] 0.0, 128
    %378 = vxpose.xlu0.b32.cont [8/16] 0.0, 128
    %379 = vxpose.xlu0.b32.cont [9/16] 0.0, 128
    %380 = vxpose.xlu0.b32.cont [10/16] 0.0, 128
    %381 = vxpose.xlu0.b32.cont [11/16] 0.0, 128
    %382 = vxpose.xlu0.b32.cont [12/16] 0.0, 128
    %383 = vxpose.xlu0.b32.cont [13/16] 0.0, 128
    %384 = vxpose.xlu0.b32.cont [14/16] 0.0, 128
    %385 = vxpose.xlu0.b32.cont [15/16] 0.0, 128
    %386 = vxpose.xlu0.b32.end [16/16] 0.0, 128
    %v387 = vpop.trf.xlu0
    %v388 = vpop.trf.xlu0
    %v389 = vpop.trf.xlu0
    %v390 = vpop.trf.xlu0
    %v391 = vpop.trf.xlu0
    %v392 = vpop.trf.xlu0
    %v393 = vpop.trf.xlu0
    %v394 = vpop.trf.xlu0
    %v395 = vpop.trf.xlu0
    %v396 = vpop.trf.xlu0
    %v397 = vpop.trf.xlu0
    %v398 = vpop.trf.xlu0
    %v399 = vpop.trf.xlu0
    %v400 = vpop.trf.xlu0
    %v401 = vpop.trf.xlu0
    %v402 = vpop.trf.xlu0
    %vm403 = vcmask 64512
    %v405 = vsel %vm403, %v387, 0
    %v408 = vsel %vm403, %v211, 0
    %v411 = vsel %vm403, %v214, 0
    %413 = vmatprep.subr.mxu0 0.0
    %414 = vmatpush1.xpose.msra.mxu0 %v408
    %415 = vmatprep.subr.mxu0 0.0
    %416 = vmatpush1.xpose.msra.mxu0 %v411
    %417 = vmatprep.subr.mxu0 0.0
    %418 = vmatpush1.xpose.msra.mxu0 0.0
    %419 = vmatprep.subr.mxu0 0.0
    %420 = vmatpush1.xpose.msra.mxu0 0.0
    %421 = vmatprep.subr.mxu0 0.0
    %422 = vmatpush1.xpose.msra.mxu0 0.0
    %423 = vmatprep.subr.mxu0 0.0
    %424 = vmatpush1.xpose.msra.mxu0 0.0
    %425 = vmatprep.subr.mxu0 0.0
    %426 = vmatpush1.xpose.msra.mxu0 0.0
    %427 = vmatprep.subr.mxu0 0.0
    %428 = vmatpush1.xpose.msra.mxu0 0.0
    %429 = vmatprep.subr.mxu0 0.0
    %430 = vmatpush1.xpose.msra.mxu0 0.0
    %431 = vmatprep.subr.mxu0 0.0
    %432 = vmatpush1.xpose.msra.mxu0 0.0
    %433 = vmatprep.subr.mxu0 0.0
    %434 = vmatpush1.xpose.msra.mxu0 0.0
    %435 = vmatprep.subr.mxu0 0.0
    %436 = vmatpush1.xpose.msra.mxu0 0.0
    %437 = vmatprep.subr.mxu0 0.0
    %438 = vmatpush1.xpose.msra.mxu0 0.0
    %439 = vmatprep.subr.mxu0 0.0
    %440 = vmatpush1.xpose.msra.mxu0 0.0
    %441 = vmatprep.subr.mxu0 0.0
    %442 = vmatpush1.xpose.msra.mxu0 0.0
    %443 = vmatprep.subr.mxu0 0.0
    %444 = vmatpush1.xpose.msra.mxu0 0.0
    %445 = vmatprep.subr.mxu0 0.0
    %446 = vmatpush1.xpose.msra.mxu0 0.0
    %447 = vmatprep.subr.mxu0 0.0
    %448 = vmatpush1.xpose.msra.mxu0 0.0
    %449 = vmatprep.subr.mxu0 0.0
    %450 = vmatpush1.xpose.msra.mxu0 0.0
    %451 = vmatprep.subr.mxu0 0.0
    %452 = vmatpush1.xpose.msra.mxu0 0.0
    %453 = vmatprep.subr.mxu0 0.0
    %454 = vmatpush1.xpose.msra.mxu0 0.0
    %455 = vmatprep.subr.mxu0 0.0
    %456 = vmatpush1.xpose.msra.mxu0 0.0
    %457 = vmatprep.subr.mxu0 0.0
    %458 = vmatpush1.xpose.msra.mxu0 0.0
    %459 = vmatprep.subr.mxu0 0.0
    %460 = vmatpush1.xpose.msra.mxu0 0.0
    %461 = vmatprep.subr.mxu0 0.0
    %462 = vmatpush1.xpose.msra.mxu0 0.0
    %463 = vmatprep.subr.mxu0 0.0
    %464 = vmatpush1.xpose.msra.mxu0 0.0
    %465 = vmatprep.subr.mxu0 0.0
    %466 = vmatpush1.xpose.msra.mxu0 0.0
    %467 = vmatprep.subr.mxu0 0.0
    %468 = vmatpush1.xpose.msra.mxu0 0.0
    %469 = vmatprep.subr.mxu0 0.0
    %470 = vmatpush1.xpose.msra.mxu0 0.0
    %471 = vmatprep.subr.mxu0 0.0
    %472 = vmatpush1.xpose.msra.mxu0 0.0
    %473 = vmatprep.subr.mxu0 0.0
    %474 = vmatpush1.xpose.msra.mxu0 0.0
    %475 = vmatprep.subr.mxu0 0.0
    %476 = vmatpush1.xpose.msra.mxu0 0.0
    %477 = vmatprep.mubr.f32.mxu0 0.0
    %478 = vmatmul.mubr.f32.gmra.mrb[0].mxu0 %v405
    %v479 = vpop.f32.mrb[0].mxu0
    %v480 = vadd.f32 0.0, %v479
    %v481 = vpop.f32.mrb[0].mxu0
    %482 = vdwg.mxu0
    %483 = vxpose.xlu0.b32.start [1/16] %v370, 128
    %484 = vxpose.xlu0.b32.cont [2/16] 0.0, 128
    %485 = vxpose.xlu0.b32.cont [3/16] 0.0, 128
    %486 = vxpose.xlu0.b32.cont [4/16] 0.0, 128
    %487 = vxpose.xlu0.b32.cont [5/16] 0.0, 128
    %488 = vxpose.xlu0.b32.cont [6/16] 0.0, 128
    %489 = vxpose.xlu0.b32.cont [7/16] 0.0, 128
    %490 = vxpose.xlu0.b32.cont [8/16] 0.0, 128
    %491 = vxpose.xlu0.b32.cont [9/16] 0.0, 128
    %492 = vxpose.xlu0.b32.cont [10/16] 0.0, 128
    %493 = vxpose.xlu0.b32.cont [11/16] 0.0, 128
    %494 = vxpose.xlu0.b32.cont [12/16] 0.0, 128
    %495 = vxpose.xlu0.b32.cont [13/16] 0.0, 128
    %496 = vxpose.xlu0.b32.cont [14/16] 0.0, 128
    %497 = vxpose.xlu0.b32.cont [15/16] 0.0, 128
    %498 = vxpose.xlu0.b32.end [16/16] 0.0, 128
    %v499 = vpop.trf.xlu0
    %v500 = vpop.trf.xlu0
    %v501 = vpop.trf.xlu0
    %v502 = vpop.trf.xlu0
    %v503 = vpop.trf.xlu0
    %v504 = vpop.trf.xlu0
    %v505 = vpop.trf.xlu0
    %v506 = vpop.trf.xlu0
    %v507 = vpop.trf.xlu0
    %v508 = vpop.trf.xlu0
    %v509 = vpop.trf.xlu0
    %v510 = vpop.trf.xlu0
    %v511 = vpop.trf.xlu0
    %v512 = vpop.trf.xlu0
    %v513 = vpop.trf.xlu0
    %v514 = vpop.trf.xlu0
    %v516 = vsel %vm403, %v499, 0
    %v519 = vsel %vm403, %v258, 0
    %v522 = vsel %vm403, %v261, 0
    %524 = vmatprep.subr.mxu0 0.0
    %525 = vmatpush1.xpose.msra.mxu0 %v519
    %526 = vmatprep.subr.mxu0 0.0
    %527 = vmatpush1.xpose.msra.mxu0 %v522
    %528 = vmatprep.subr.mxu0 0.0
    %529 = vmatpush1.xpose.msra.mxu0 0.0
    %530 = vmatprep.subr.mxu0 0.0
    %531 = vmatpush1.xpose.msra.mxu0 0.0
    %532 = vmatprep.subr.mxu0 0.0
    %533 = vmatpush1.xpose.msra.mxu0 0.0
    %534 = vmatprep.subr.mxu0 0.0
    %535 = vmatpush1.xpose.msra.mxu0 0.0
    %536 = vmatprep.subr.mxu0 0.0
    %537 = vmatpush1.xpose.msra.mxu0 0.0
    %538 = vmatprep.subr.mxu0 0.0
    %539 = vmatpush1.xpose.msra.mxu0 0.0
    %540 = vmatprep.subr.mxu0 0.0
    %541 = vmatpush1.xpose.msra.mxu0 0.0
    %542 = vmatprep.subr.mxu0 0.0
    %543 = vmatpush1.xpose.msra.mxu0 0.0
    %544 = vmatprep.subr.mxu0 0.0
    %545 = vmatpush1.xpose.msra.mxu0 0.0
    %546 = vmatprep.subr.mxu0 0.0
    %547 = vmatpush1.xpose.msra.mxu0 0.0
    %548 = vmatprep.subr.mxu0 0.0
    %549 = vmatpush1.xpose.msra.mxu0 0.0
    %550 = vmatprep.subr.mxu0 0.0
    %551 = vmatpush1.xpose.msra.mxu0 0.0
    %552 = vmatprep.subr.mxu0 0.0
    %553 = vmatpush1.xpose.msra.mxu0 0.0
    %554 = vmatprep.subr.mxu0 0.0
    %555 = vmatpush1.xpose.msra.mxu0 0.0
    %556 = vmatprep.subr.mxu0 0.0
    %557 = vmatpush1.xpose.msra.mxu0 0.0
    %558 = vmatprep.subr.mxu0 0.0
    %559 = vmatpush1.xpose.msra.mxu0 0.0
    %560 = vmatprep.subr.mxu0 0.0
    %561 = vmatpush1.xpose.msra.mxu0 0.0
    %562 = vmatprep.subr.mxu0 0.0
    %563 = vmatpush1.xpose.msra.mxu0 0.0
    %564 = vmatprep.subr.mxu0 0.0
    %565 = vmatpush1.xpose.msra.mxu0 0.0
    %566 = vmatprep.subr.mxu0 0.0
    %567 = vmatpush1.xpose.msra.mxu0 0.0
    %568 = vmatprep.subr.mxu0 0.0
    %569 = vmatpush1.xpose.msra.mxu0 0.0
    %570 = vmatprep.subr.mxu0 0.0
    %571 = vmatpush1.xpose.msra.mxu0 0.0
    %572 = vmatprep.subr.mxu0 0.0
    %573 = vmatpush1.xpose.msra.mxu0 0.0
    %574 = vmatprep.subr.mxu0 0.0
    %575 = vmatpush1.xpose.msra.mxu0 0.0
    %576 = vmatprep.subr.mxu0 0.0
    %577 = vmatpush1.xpose.msra.mxu0 0.0
    %578 = vmatprep.subr.mxu0 0.0
    %579 = vmatpush1.xpose.msra.mxu0 0.0
    %580 = vmatprep.subr.mxu0 0.0
    %581 = vmatpush1.xpose.msra.mxu0 0.0
    %582 = vmatprep.subr.mxu0 0.0
    %583 = vmatpush1.xpose.msra.mxu0 0.0
    %584 = vmatprep.subr.mxu0 0.0
    %585 = vmatpush1.xpose.msra.mxu0 0.0
    %586 = vmatprep.subr.mxu0 0.0
    %587 = vmatpush1.xpose.msra.mxu0 0.0
    %588 = vmatprep.mubr.f32.mxu0 0.0
    %589 = vmatmul.mubr.f32.gmra.mrb[0].mxu0 %v516
    %v590 = vpop.f32.mrb[0].mxu0
    %v591 = vadd.f32 0.0, %v590
    %v592 = vpop.f32.mrb[0].mxu0
    %593 = vdwg.mxu0
    %v594 = vld [vmem:[%s6] sm:$0x1]
    %v596 = vsel %vm88, %v594, 0
    %598 = vmatprep.subr.bf16.mxu0 0
    %599 = vmatpush1.bf16.xpose.msra.mxu0 %v90
    %600 = vmatprep.subr.bf16.mxu0 0
    %601 = vmatpush1.bf16.xpose.msra.mxu0 0
    %602 = vmatprep.subr.bf16.mxu0 0
    %603 = vmatpush1.bf16.xpose.msra.mxu0 0
    %604 = vmatprep.subr.bf16.mxu0 0
    %605 = vmatpush1.bf16.xpose.msra.mxu0 0
    %606 = vmatprep.subr.bf16.mxu0 0
    %607 = vmatpush1.bf16.xpose.msra.mxu0 0
    %608 = vmatprep.subr.bf16.mxu0 0
    %609 = vmatpush1.bf16.xpose.msra.mxu0 0
    %610 = vmatprep.subr.bf16.mxu0 0
    %611 = vmatpush1.bf16.xpose.msra.mxu0 0
    %612 = vmatprep.subr.bf16.mxu0 0
    %613 = vmatpush1.bf16.xpose.msra.mxu0 0
    %614 = vmatprep.subr.bf16.mxu0 0
    %615 = vmatpush1.bf16.xpose.msra.mxu0 0
    %616 = vmatprep.subr.bf16.mxu0 0
    %617 = vmatpush1.bf16.xpose.msra.mxu0 0
    %618 = vmatprep.subr.bf16.mxu0 0
    %619 = vmatpush1.bf16.xpose.msra.mxu0 0
    %620 = vmatprep.subr.bf16.mxu0 0
    %621 = vmatpush1.bf16.xpose.msra.mxu0 0
    %622 = vmatprep.subr.bf16.mxu0 0
    %623 = vmatpush1.bf16.xpose.msra.mxu0 0
    %624 = vmatprep.subr.bf16.mxu0 0
    %625 = vmatpush1.bf16.xpose.msra.mxu0 0
    %626 = vmatprep.subr.bf16.mxu0 0
    %627 = vmatpush1.bf16.xpose.msra.mxu0 0
    %628 = vmatprep.subr.bf16.mxu0 0
    %629 = vmatpush1.bf16.xpose.msra.mxu0 0
    %630 = vmatprep.mubr.bf16.mxu0 0
    %631 = vmatmul.mubr.bf16.gmra.mrb[0].mxu0 %v596
    %v632 = vpop.f32.mrb[0].mxu0
    %v633 = vadd.f32 0.0, %v632
    %v634 = vpop.f32.mrb[0].mxu0
    %v635 = vpop.f32.mrb[0].mxu0
    %v636 = vpop.f32.mrb[0].mxu0
    %637 = vdwg.mxu0
    %638 = vmatprep.subr.bf16.mxu0 0
    %639 = vmatpush1.bf16.xpose.msra.mxu0 %v93
    %640 = vmatprep.subr.bf16.mxu0 0
    %641 = vmatpush1.bf16.xpose.msra.mxu0 0
    %642 = vmatprep.subr.bf16.mxu0 0
    %643 = vmatpush1.bf16.xpose.msra.mxu0 0
    %644 = vmatprep.subr.bf16.mxu0 0
    %645 = vmatpush1.bf16.xpose.msra.mxu0 0
    %646 = vmatprep.subr.bf16.mxu0 0
    %647 = vmatpush1.bf16.xpose.msra.mxu0 0
    %648 = vmatprep.subr.bf16.mxu0 0
    %649 = vmatpush1.bf16.xpose.msra.mxu0 0
    %650 = vmatprep.subr.bf16.mxu0 0
    %651 = vmatpush1.bf16.xpose.msra.mxu0 0
    %652 = vmatprep.subr.bf16.mxu0 0
    %653 = vmatpush1.bf16.xpose.msra.mxu0 0
    %654 = vmatprep.subr.bf16.mxu0 0
    %655 = vmatpush1.bf16.xpose.msra.mxu0 0
    %656 = vmatprep.subr.bf16.mxu0 0
    %657 = vmatpush1.bf16.xpose.msra.mxu0 0
    %658 = vmatprep.subr.bf16.mxu0 0
    %659 = vmatpush1.bf16.xpose.msra.mxu0 0
    %660 = vmatprep.subr.bf16.mxu0 0
    %661 = vmatpush1.bf16.xpose.msra.mxu0 0
    %662 = vmatprep.subr.bf16.mxu0 0
    %663 = vmatpush1.bf16.xpose.msra.mxu0 0
    %664 = vmatprep.subr.bf16.mxu0 0
    %665 = vmatpush1.bf16.xpose.msra.mxu0 0
    %666 = vmatprep.subr.bf16.mxu0 0
    %667 = vmatpush1.bf16.xpose.msra.mxu0 0
    %668 = vmatprep.subr.bf16.mxu0 0
    %669 = vmatpush1.bf16.xpose.msra.mxu0 0
    %670 = vmatprep.mubr.bf16.mxu0 0
    %671 = vmatmul.mubr.bf16.gmra.mrb[0].mxu0 %v596
    %v672 = vpop.f32.mrb[0].mxu0
    %v673 = vadd.f32 0.0, %v672
    %v674 = vpop.f32.mrb[0].mxu0
    %v675 = vpop.f32.mrb[0].mxu0
    %v676 = vpop.f32.mrb[0].mxu0
    %677 = vdwg.mxu0
    %v678 = vld [vmem:[#allocation5] sm:$0x3]
    %v679 = vld [vmem:[#allocation5 + $0x2] sm:$0x3]
    %v680 = vadd.f32 %v678, %v633
    %v681 = vadd.f32 %v679, %v673
    %v686 = vlaneseq
    %v687 = vand.u32 %v686, 127
    %v688 = vlaneseq
    %v689 = vshrl.u32 %v688, 7
    %v690 = vsub.s32 %v687, %v689
    %v691 = vrot.slane %v164, %v690
    %v692 = vadd.s32 %v687, 4294967288
    %v693 = vlaneseq
    %v694 = vshrl.u32 %v693, 7
    %v695 = vsub.s32 %v692, %v694
    %v696 = vrot.slane %v165, %v695
    %vm697 = vcmask 130112
    %v698 = vsel %vm697, %v696, %v691
    %v699 = vlaneseq
    %v700 = vshrl.u32 %v699, 7
    %v701 = vsub.s32 %v687, %v700
    %v702 = vrot.slane %v166, %v701
    %v703 = vlaneseq
    %v704 = vshrl.u32 %v703, 7
    %v705 = vsub.s32 %v692, %v704
    %v706 = vrot.slane %v167, %v705
    %v707 = vsel %vm697, %v706, %v702
    %v710 = vmul.f32 %v480, %v698
    %v711 = vmul.f32 %v591, %v707
    %v712 = vadd.f32 %v680, %v710
    %v713 = vadd.f32 %v681, %v711
    %vm714 = vcmask 123904
    %715 = vst.msk [vmem:[#allocation7] sm:$0x3] %vm714, %v712
    %716 = vst.msk [vmem:[#allocation7 + $0x2] sm:$0x3] %vm714, %v713
    // Predicated region
    $region38: #{tpu_custom_call.1} parent=1 // pred_check
      _
    $region39: #{tpu_custom_call.1} parent=1 // pred_check_branch
      %718 = sbr.rel (0) target = $region41
    $region40: #{tpu_custom_call.1} parent=1 // pred_region
      %s720 = ssub.s32 64, 64
      %721 = vsyncadd [#allocation4], %s720
      %s722 = sshll.u32 [#allocation7], 4
      %s723 = int_to_ptr.vmem [resolvable:$true] %s722
      %728 = dma.vmem_to_hbm [thread:$0]  %s723, 64, %s7, [#allocation4], 32, 32, 2
    $region41: #{tpu_custom_call.1} parent=1 // pred_fallthru
      _
    // Predicated region
    $region42: #{tpu_custom_call.1} parent=1 // pred_check
      _
    $region43: #{tpu_custom_call.1} parent=1 // pred_check_branch
      %730 = sbr.rel (0) target = $region45
    $region44: #{tpu_custom_call.1} parent=1 // pred_region
      %731 = dma.done [#allocation4], 64
    $region45: #{tpu_custom_call.1} parent=1 // pred_fallthru
      _
    %732 = vsyncpa [#allocation3], 1
    %733 = vsyncpa [#allocation6], 1
    %734 = vsyncpa [#allocation4], 1

</llo_original>
